<compile_context>
chip_gen: v7x
topology: tpu7x:2x2x1
jax: 0.10.0
libtpu: 0.0.40
codegen_flags: <defaults>
</compile_context>

<pallas_src>
import jax
import jax.numpy as jnp
from jax.experimental import pallas as pl
from jax.experimental.pallas import tpu as pltpu


def _round_up(x, m):
    return ((x + m - 1) // m) * m


def _scoped_vmem_limit_bytes():
    """Per-chip scoped VMEM budget: ~half of physical VMEM, capped at 64 MiB."""
    try:
        cap = pltpu.get_tpu_info().vmem_capacity_bytes
    except Exception:
        cap = 64 * 1024 * 1024
    return int(min(64 * 1024 * 1024, max(32 * 1024 * 1024, cap // 2)))


# ---------------------------------------------------------------------------
# Pallas kernel: one NGCF propagation layer (tiled).
#   grid = (row tiles i, K tiles k); acc accumulates (L @ E) for row tile i.
#   Epilogue at the last k:
#     L_I_E = L@E + E        (== (L+I) @ E)
#     L_E_E = (L@E) * E
#     msg   = [L_I_E | L_E_E] @ Wcat + bsum
#     E_new = LeakyReLU(msg, 0.2)
#     E_nrm = E_new * rsqrt(max(sum(E_new^2, axis=1), 1e-24))
#   Outputs: E_new (bf16, feeds the next layer) and E_nrm (f32).
# ---------------------------------------------------------------------------
def _make_ngcf_layer_kernel(resident_e: bool, TK: int):
    def kernel(l_ref, e_ref, ei_ref, w_ref, b_ref, new_ref, nrm_ref, acc_ref):
        k = pl.program_id(1)

        @pl.when(k == 0)
        def _():
            acc_ref[...] = jnp.zeros_like(acc_ref)

        if resident_e:
            # E resident in VMEM: slice the k-th TK-row chunk in-kernel.
            e_k = e_ref[pl.ds(pl.multiple_of(k * TK, TK), TK), :]
        else:
            e_k = e_ref[...]

        # Graph aggregation: bf16 x bf16 operands, f32 accumulation on the MXU.
        acc_ref[...] += jnp.dot(l_ref[...], e_k,
                                preferred_element_type=jnp.float32)

        @pl.when(k == pl.num_programs(1) - 1)
        def _():
            e_i = ei_ref[...].astype(jnp.float32)               # (TM, Dp_in)
            l_e = acc_ref[...]                                  # L @ E   (f32)
            l_i_e = l_e + e_i                                   # (L + I) @ E
            l_e_e = l_e * e_i                                   # (L @ E) * E
            feat = jnp.concatenate([l_i_e, l_e_e], axis=1)      # (TM, 2*Dp_in)
            msg = jnp.dot(feat, w_ref[...],
                          preferred_element_type=jnp.float32) + b_ref[...]
            e_new = jnp.where(msg > 0, msg, 0.2 * msg)          # LeakyReLU(0.2)
            sq = jnp.sum(e_new * e_new, axis=1, keepdims=True)  # row ||.||^2
            scale = jax.lax.rsqrt(jnp.maximum(sq, 1e-24))       # == 1/max(||.||,1e-12)
            new_ref[...] = e_new.astype(new_ref.dtype)
            nrm_ref[...] = e_new * scale

    return kernel


def ngcf_layer(L_bf16, E_bf16, W1, b1, W2, b2, d_in, d_out, TM, TK, vmem_limit):
    """One propagation layer.
    L_bf16: (N_pad, N_pad) bf16; E_bf16: (N_pad, Dp_in) bf16 (padded lanes/rows zero).
    Returns (E_new_bf16, E_norm_f32), both (N_pad, Dp_out)."""
    N_pad, Dp_in = E_bf16.shape
    Dp_out = _round_up(d_out, 128)

    # Fuse the two projections: stacked weight + pre-summed bias (zero padded so
    # padded feature lanes stay exactly zero through the layer).
    W1p = jnp.zeros((Dp_in, Dp_out), jnp.float32).at[:d_in, :d_out].set(W1)
    W2p = jnp.zeros((Dp_in, Dp_out), jnp.float32).at[:d_in, :d_out].set(W2)
    Wcat = jnp.concatenate([W1p, W2p], axis=0)              # (2*Dp_in, Dp_out)
    bsum = jnp.zeros((1, Dp_out), jnp.float32).at[0, :d_out].set(b1 + b2)

    # E fully resident in VMEM when its (double-buffered) footprint fits a
    # quarter of the scoped budget; otherwise stream TK-row chunks per k step.
    resident_e = (2 * N_pad * Dp_in * 2) <= (vmem_limit // 4)
    if resident_e:
        e_spec = pl.BlockSpec((N_pad, Dp_in), lambda i, k: (0, 0))
    else:
        e_spec = pl.BlockSpec((TK, Dp_in), lambda i, k: (k, 0))

    grid = (N_pad // TM, N_pad // TK)
    e_new_bf16, e_norm = pl.pallas_call(
        _make_ngcf_layer_kernel(resident_e, TK),
        out_shape=(
            jax.ShapeDtypeStruct((N_pad, Dp_out), jnp.bfloat16),   # E_new -> next layer
            jax.ShapeDtypeStruct((N_pad, Dp_out), jnp.float32),    # E_norm -> all_E
        ),
        grid_spec=pltpu.PrefetchScalarGridSpec(
            num_scalar_prefetch=0,
            grid=grid,
            in_specs=[
                pl.BlockSpec((TM, TK), lambda i, k: (i, k)),             # L tile (bf16)
                e_spec,                                                  # E (resident or k-stream)
                pl.BlockSpec((TM, Dp_in), lambda i, k: (i, 0)),          # E rows of tile i (bf16)
                pl.BlockSpec((2 * Dp_in, Dp_out), lambda i, k: (0, 0)),  # stacked W (resident)
                pl.BlockSpec((1, Dp_out), lambda i, k: (0, 0)),          # summed bias
            ],
            out_specs=[
                pl.BlockSpec((TM, Dp_out), lambda i, k: (i, 0)),
                pl.BlockSpec((TM, Dp_out), lambda i, k: (i, 0)),
            ],
            scratch_shapes=[pltpu.VMEM((TM, Dp_in), jnp.float32)],
        ),
        compiler_params=pltpu.CompilerParams(
            dimension_semantics=("parallel", "arbitrary"),
            vmem_limit_bytes=vmem_limit,
        ),
    )(L_bf16, E_bf16, E_bf16, Wcat, bsum)
    return e_new_bf16, e_norm


# ---------------------------------------------------------------------------
# Tile selection + parameter init + forward glue in JAX
# ---------------------------------------------------------------------------
def _pick_tiles(N):
    n128 = _round_up(N, 128)
    TK = 128
    for cand in (256, 512, 1024, 2048):
        if n128 >= cand:
            TK = cand
    TM = min(512, TK)
    N_pad = _round_up(N, TK)           # TK (and TM) divide N_pad
    # Keep >= 2 row tiles when possible so both v7x TensorCores are fed.
    if N_pad // TM < 2 and N_pad >= 256:
        TM = N_pad // 2
    return TM, TK, N_pad


def xavier_uniform(key, shape):
    fan_in, fan_out = shape[0], shape[1]
    bound = (6.0 / (fan_in + fan_out)) ** 0.5
    return jax.random.uniform(key, shape, jnp.float32, -bound, bound)


def init_ngcf_params(key, n_user, n_item, embed_size, layer_size):
    keys = jax.random.split(key, 2 + 4 * len(layer_size))
    params = {
        "user_embedding": xavier_uniform(keys[0], (n_user, embed_size)),
        "item_embedding": xavier_uniform(keys[1], (n_item, embed_size)),
        "w1": [], "b1": [], "w2": [], "b2": [],
    }
    dims = [embed_size] + list(layer_size)
    for k in range(len(layer_size)):
        d_in, d_out = dims[k], dims[k + 1]
        # nn.Linear stores (out, in); keep pre-transposed (in, out) for x @ W.
        params["w1"].append(xavier_uniform(keys[2 + 4 * k + 0], (d_in, d_out)))
        params["b1"].append(jnp.zeros((d_out,), jnp.float32))
        params["w2"].append(xavier_uniform(keys[2 + 4 * k + 1], (d_in, d_out)))
        params["b2"].append(jnp.zeros((d_out,), jnp.float32))
    return params


def ngcf_forward(params, L, users, pos_items, neg_items, n_user):
    """NGCF.forward with node_flag=False (no node dropout), eval-mode mess dropout."""
    N = L.shape[0]
    TM, TK, N_pad = _pick_tiles(N)
    vmem_limit = _scoped_vmem_limit_bytes()

    E0 = jnp.concatenate(
        [params["user_embedding"], params["item_embedding"]], axis=0)
    d0 = E0.shape[1]
    Dp0 = _round_up(d0, 128)

    # bf16 E for the graph matmul (padded lanes/rows stay exactly zero).
    E_bf16 = (jnp.zeros((N_pad, Dp0), jnp.bfloat16)
              .at[:N, :d0].set(E0.astype(jnp.bfloat16)))
    # bf16 L, cast before padding (no N_pad^2 f32 intermediate).
    L_bf16 = jnp.pad(L.astype(jnp.bfloat16),
                     ((0, N_pad - N), (0, N_pad - N)))

    all_E = [E0]
    d_in = d0
    for i in range(len(params["w1"])):
        d_out = params["w1"][i].shape[1]
        E_bf16, E_norm = ngcf_layer(
            L_bf16, E_bf16,
            params["w1"][i], params["b1"][i],
            params["w2"][i], params["b2"][i],
            d_in, d_out, TM, TK, vmem_limit)
        all_E.append(E_norm[:N, :d_out])
        d_in = d_out
    all_E = jnp.concatenate(all_E, axis=1)

    all_users_emb = all_E[:n_user, :]
    all_items_emb = all_E[n_user:, :]
    u_embeddings = all_users_emb[users - 1, :]
    pos_i_embeddings = all_items_emb[pos_items - 1, :]
    neg_i_embeddings = (all_items_emb[neg_items - 1, :]
                        if neg_items.shape[0] > 0
                        else jnp.zeros((0, all_E.shape[1]), jnp.float32))
    return u_embeddings, pos_i_embeddings, neg_i_embeddings


if __name__ == "__main__":
    n_user, n_item = 16, 24
    N = n_user + n_item
    embed_size = 32
    layer_size = [32, 32]

    root = jax.random.PRNGKey(0)
    k_param, k_lap = jax.random.split(root)

    params = init_ngcf_params(k_param, n_user, n_item, embed_size, layer_size)

    # Synthetic sparse-ish normalized Laplacian represented densely.
    adj = (jax.random.uniform(k_lap, (N, N)) < 0.15).astype(jnp.float32)
    adj = adj + adj.T
    deg = jnp.maximum(adj.sum(axis=1, keepdims=True), 1.0)
    L = adj / deg                                # row-normalized adjacency

    users = jnp.array([1, 2, 3], dtype=jnp.int32)       # 1-indexed, as in forward()
    pos_items = jnp.array([1, 5, 7], dtype=jnp.int32)
    neg_items = jnp.array([2, 4, 6], dtype=jnp.int32)

    u_emb, pos_emb, neg_emb = ngcf_forward(
        params, L, users, pos_items, neg_items, n_user)
    jax.block_until_ready((u_emb, pos_emb, neg_emb))

    assert u_emb.shape == (3, embed_size + sum(layer_size))
    assert pos_emb.shape == (3, embed_size + sum(layer_size))
    assert neg_emb.shape == (3, embed_size + sum(layer_size))
    print("KERNEL_OK")
</pallas_src>

<mosaic_0001>
module attributes {stable_mosaic.version = 11 : i64} {
  func.func @kernel(%arg0: i32, %arg1: i32, %arg2: memref<128x128xbf16, #tpu.memory_space<vmem>>, %arg3: memref<128x128xbf16, #tpu.memory_space<vmem>>, %arg4: memref<128x128xbf16, #tpu.memory_space<vmem>>, %arg5: memref<256x128xf32, #tpu.memory_space<vmem>>, %arg6: memref<1x128xf32, #tpu.memory_space<vmem>>, %arg7: memref<128x128xbf16, #tpu.memory_space<vmem>>, %arg8: memref<128x128xf32, #tpu.memory_space<vmem>>, %arg9: memref<128x128xf32, #tpu.memory_space<vmem>>) attributes {dimension_semantics = [#tpu.dimension_semantics<parallel>, #tpu.dimension_semantics<arbitrary>], iteration_bounds = array<i64: 1, 1>, scalar_prefetch = 0 : i64, scratch_operands = 1 : i64, tpu.core_type = #tpu.core_type<tc>, window_params = [{transform_indices = @transform_0, window_bounds = array<i64: 128, 128>}, {pipeline_mode = #tpu.pipeline_mode<synchronous>, transform_indices = @transform_1, window_bounds = array<i64: 128, 128>}, {transform_indices = @transform_2, window_bounds = array<i64: 128, 128>}, {pipeline_mode = #tpu.pipeline_mode<synchronous>, transform_indices = @transform_3, window_bounds = array<i64: 256, 128>}, {pipeline_mode = #tpu.pipeline_mode<synchronous>, transform_indices = @transform_4, window_bounds = array<i64: 1, 128>}, {transform_indices = @transform_5, window_bounds = array<i64: 128, 128>}, {transform_indices = @transform_6, window_bounds = array<i64: 128, 128>}]} {
    %c0_i32 = arith.constant 0 : i32
    %0 = arith.cmpi eq, %arg1, %c0_i32 : i32
    %1 = arith.extui %0 : i1 to i32
    %c0_i32_0 = arith.constant 0 : i32
    %2 = arith.cmpi ne, %1, %c0_i32_0 : i32
    scf.if %2 {
      %cst_9 = arith.constant 0.000000e+00 : f32
      %15 = vector.broadcast %cst_9 : f32 to vector<128x128xf32>
      %c0_10 = arith.constant 0 : index
      %c0_11 = arith.constant 0 : index
      %16 = vector.load %arg9[%c0_10, %c0_11] : memref<128x128xf32, #tpu.memory_space<vmem>>, vector<128x128xf32>
      tpu.vector_store %arg9[%c0_10, %c0_11], %15 {strides = array<i32>} : memref<128x128xf32, #tpu.memory_space<vmem>>, vector<128x128xf32>,
    } else {
    }
    %c128_i32 = arith.constant 128 : i32
    %3 = arith.muli %arg1, %c128_i32 : i32
    %4 = tpu.assume_multiple %3, 128 : i32
    %5 = arith.index_cast %4 : i32 to index
    %c0 = arith.constant 0 : index
    %6 = vector.load %arg3[%5, %c0] : memref<128x128xbf16, #tpu.memory_space<vmem>>, vector<128x128xbf16>
    %c0_1 = arith.constant 0 : index
    %c0_2 = arith.constant 0 : index
    %7 = vector.load %arg9[%c0_1, %c0_2] : memref<128x128xf32, #tpu.memory_space<vmem>>, vector<128x128xf32>
    %c0_3 = arith.constant 0 : index
    %c0_4 = arith.constant 0 : index
    %8 = vector.load %arg2[%c0_3, %c0_4] : memref<128x128xbf16, #tpu.memory_space<vmem>>, vector<128x128xbf16>
    %cst = arith.constant dense<0.000000e+00> : vector<128x128xf32>
    %9 = tpu.matmul %8, %6, %cst {dimension_numbers = #tpu.dot_dimension_numbers<[1], [0], [0], [1], [0, 0, 1, 1], [], []>} : vector<128x128xbf16>, vector<128x128xbf16>, vector<128x128xf32> -> vector<128x128xf32>
    %10 = arith.addf %7, %9 : vector<128x128xf32>
    %c0_5 = arith.constant 0 : index
    %c0_6 = arith.constant 0 : index
    %11 = vector.load %arg9[%c0_5, %c0_6] : memref<128x128xf32, #tpu.memory_space<vmem>>, vector<128x128xf32>
    tpu.vector_store %arg9[%c0_5, %c0_6], %10 {strides = array<i32>} : memref<128x128xf32, #tpu.memory_space<vmem>>, vector<128x128xf32>,
    %c0_i32_7 = arith.constant 0 : i32
    %12 = arith.cmpi eq, %arg1, %c0_i32_7 : i32
    %13 = arith.extui %12 : i1 to i32
    %c0_i32_8 = arith.constant 0 : i32
    %14 = arith.cmpi ne, %13, %c0_i32_8 : i32
    scf.if %14 {
      %c0_9 = arith.constant 0 : index
      %c0_10 = arith.constant 0 : index
      %15 = vector.load %arg4[%c0_9, %c0_10] : memref<128x128xbf16, #tpu.memory_space<vmem>>, vector<128x128xbf16>
      %16 = arith.extf %15 : vector<128x128xbf16> to vector<128x128xf32>
      %c0_11 = arith.constant 0 : index
      %c0_12 = arith.constant 0 : index
      %17 = vector.load %arg9[%c0_11, %c0_12] : memref<128x128xf32, #tpu.memory_space<vmem>>, vector<128x128xf32>
      %18 = arith.addf %17, %16 : vector<128x128xf32>
      %19 = arith.mulf %17, %16 : vector<128x128xf32>
      %20 = tpu.concatenate %18, %19 in 1 : vector<128x128xf32>, vector<128x128xf32> -> vector<128x256xf32>
      %c0_13 = arith.constant 0 : index
      %c0_14 = arith.constant 0 : index
      %21 = vector.load %arg5[%c0_13, %c0_14] : memref<256x128xf32, #tpu.memory_space<vmem>>, vector<256x128xf32>
      %cst_15 = arith.constant dense<0.000000e+00> : vector<128x128xf32>
      %22 = tpu.matmul %20, %21, %cst_15 {dimension_numbers = #tpu.dot_dimension_numbers<[1], [0], [0], [1], [0, 0, 1, 1], [], []>} : vector<128x256xf32>, vector<256x128xf32>, vector<128x128xf32> -> vector<128x128xf32>
      %c0_16 = arith.constant 0 : index
      %c0_17 = arith.constant 0 : index
      %23 = vector.load %arg6[%c0_16, %c0_17] : memref<1x128xf32, #tpu.memory_space<vmem>>, vector<1x128xf32>
      %24 = vector.broadcast %23 : vector<1x128xf32> to vector<128x128xf32>
      %25 = arith.addf %22, %24 : vector<128x128xf32>
      %cst_18 = arith.constant 0.000000e+00 : f32
      %26 = vector.broadcast %cst_18 : f32 to vector<128x128xf32>
      %27 = arith.cmpf ogt, %25, %26 : vector<128x128xf32>
      %cst_19 = arith.constant 2.000000e-01 : f32
      %28 = vector.broadcast %cst_19 : f32 to vector<128x128xf32>
      %29 = arith.mulf %28, %25 : vector<128x128xf32>
      %30 = arith.select %27, %25, %29 : vector<128x128xi1>, vector<128x128xf32>
      %31 = arith.mulf %30, %30 : vector<128x128xf32>
      %cst_20 = arith.constant dense<0.000000e+00> : vector<128xf32>
      %32 = vector.multi_reduction <add>, %31, %cst_20 [1] : vector<128x128xf32> to vector<128xf32>
      %33 = vector.shape_cast %32 : vector<128xf32> to vector<128x1xf32>
      %cst_21 = arith.constant 1.000000e-24 : f32
      %34 = vector.broadcast %cst_21 : f32 to vector<128x1xf32>
      %35 = arith.maximumf %33, %34 : vector<128x1xf32>
      %36 = math.rsqrt %35 : vector<128x1xf32>
      %37 = arith.truncf %30 : vector<128x128xf32> to vector<128x128xbf16>
      %c0_22 = arith.constant 0 : index
      %c0_23 = arith.constant 0 : index
      %38 = vector.load %arg7[%c0_22, %c0_23] : memref<128x128xbf16, #tpu.memory_space<vmem>>, vector<128x128xbf16>
      tpu.vector_store %arg7[%c0_22, %c0_23], %37 {strides = array<i32>} : memref<128x128xbf16, #tpu.memory_space<vmem>>, vector<128x128xbf16>,
      %39 = vector.broadcast %36 : vector<128x1xf32> to vector<128x128xf32>
      %40 = arith.mulf %30, %39 : vector<128x128xf32>
      %c0_24 = arith.constant 0 : index
      %c0_25 = arith.constant 0 : index
      %41 = vector.load %arg8[%c0_24, %c0_25] : memref<128x128xf32, #tpu.memory_space<vmem>>, vector<128x128xf32>
      tpu.vector_store %arg8[%c0_24, %c0_25], %40 {strides = array<i32>} : memref<128x128xf32, #tpu.memory_space<vmem>>, vector<128x128xf32>,
    } else {
    }
    return
  }
  func.func @transform_0(%arg0: i32, %arg1: i32) -> (i32, i32) {
    %c0_i32 = arith.constant 0 : i32
    return %arg0, %arg1 : i32, i32
  }
  func.func @transform_1(%arg0: i32, %arg1: i32) -> (i32, i32) {
    %c0_i32 = arith.constant 0 : i32
    %c0_i32_0 = arith.constant 0 : i32
    %c0_i32_1 = arith.constant 0 : i32
    return %c0_i32, %c0_i32_0 : i32, i32
  }
  func.func @transform_2(%arg0: i32, %arg1: i32) -> (i32, i32) {
    %c0_i32 = arith.constant 0 : i32
    %c0_i32_0 = arith.constant 0 : i32
    return %arg0, %c0_i32 : i32, i32
  }
  func.func @transform_3(%arg0: i32, %arg1: i32) -> (i32, i32) {
    %c0_i32 = arith.constant 0 : i32
    %c0_i32_0 = arith.constant 0 : i32
    %c0_i32_1 = arith.constant 0 : i32
    return %c0_i32, %c0_i32_0 : i32, i32
  }
  func.func @transform_4(%arg0: i32, %arg1: i32) -> (i32, i32) {
    %c0_i32 = arith.constant 0 : i32
    %c0_i32_0 = arith.constant 0 : i32
    %c0_i32_1 = arith.constant 0 : i32
    return %c0_i32, %c0_i32_0 : i32, i32
  }
  func.func @transform_5(%arg0: i32, %arg1: i32) -> (i32, i32) {
    %c0_i32 = arith.constant 0 : i32
    %c0_i32_0 = arith.constant 0 : i32
    return %arg0, %c0_i32 : i32, i32
  }
  func.func @transform_6(%arg0: i32, %arg1: i32) -> (i32, i32) {
    %c0_i32 = arith.constant 0 : i32
    %c0_i32_0 = arith.constant 0 : i32
    return %arg0, %c0_i32 : i32, i32
  }
}

</mosaic_0001>

<llo_original>
// kernel: tpu_custom_call.1
$region0: #{tpu_custom_call.1}
  #allocation0 [shape = 'u32[]', space=smem, size = 0x4, offset = 0x4, fixed_abs, tag = 'smem constant byte address 0x4 - core index']
  #allocation1 [shape = 'u32[144,128]{1,0:T(1,128)}', space=vmem, size = 0x12000, scoped, tag = 'internal scratch']
  #allocation2 [shape = 'f32[128,128]{1,0:T(8,128)}', space=vmem, size = 0x10000, scoped, tag = 'scratch operand']
  %s0 = inlined_call_operand.hbm [shape: bf16[128,128], index: 0, kind: input, shape index: {}]
  %s1 = inlined_call_operand.hbm [shape: bf16[128,128], index: 1, kind: input, shape index: {}]
  %s2 = inlined_call_operand.hbm [shape: bf16[128,128], index: 2, kind: input, shape index: {}]
  %s3 = inlined_call_operand.hbm [shape: f32[256,128], index: 3, kind: input, shape index: {}]
  %s4 = inlined_call_operand.vmem [shape: f32[1,128], index: 4, kind: input, shape index: {}]
  %s5 = inlined_call_operand.hbm [shape: bf16[128,128], index: 5, kind: output, shape index: {0}]
  %s6 = inlined_call_operand.hbm [shape: f32[128,128], index: 6, kind: output, shape index: {1}]
  %7 = xla_tuple %s5, %s6
  %s8 = sld [smem:[#allocation0]]
  $region62: #{tpu_custom_call.1} parent=0
    _
  %s10 = ssub.s32 1, %s8
  %s11 = scalar_select 0, %s10, %s8
  $region1: #{tpu_custom_call.1} parent=0
    #allocation3 [shape = 'u8[32768]{0}', space=vmem, size = 0x8000, scoped, tag = 'input window, operand 0, single buffered']
    #allocation4 [shape = 's32[1]{0}', space=sflag, size = 0x4, scoped, tag = 'scoped memory for tpu_custom_call.1']
    #allocation5 [shape = 's32[1]{0}', space=sflag, size = 0x4, scoped, tag = 'scoped memory for tpu_custom_call.1']
    #allocation6 [shape = 'u8[32768]{0}', space=vmem, size = 0x8000, scoped, tag = 'input window, operand 1, single buffered']
    #allocation7 [shape = 's32[1]{0}', space=sflag, size = 0x4, scoped, tag = 'scoped memory for tpu_custom_call.1']
    #allocation8 [shape = 'u8[32768]{0}', space=vmem, size = 0x8000, scoped, tag = 'input window, operand 2, single buffered']
    #allocation9 [shape = 'u8[131072]{0}', space=vmem, size = 0x20000, scoped, tag = 'input window, operand 3, single buffered']
    #allocation10 [shape = 's32[1]{0}', space=sflag, size = 0x4, scoped, tag = 'scoped memory for tpu_custom_call.1']
    #allocation11 [shape = 'u8[32768]{0}', space=vmem, size = 0x8000, scoped, tag = 'output window, operand 0, single buffered']
    #allocation12 [shape = 'u8[65536]{0}', space=vmem, size = 0x10000, scoped, tag = 'output window, operand 1, single buffered']
    #allocation13 [shape = 's32[1]{0}', space=sflag, size = 0x4, scoped, tag = 'scoped memory for tpu_custom_call.1']
    %12 = vsyncpa [#allocation4], 0
    %13 = vsyncpa [#allocation7], 0
    %14 = vsyncpa [#allocation10], 0
    %15 = vsyncpa [#allocation5], 0
    %16 = vsyncpa [#allocation13], 0
    // Predicated region
    $region2: #{tpu_custom_call.1} parent=1 // pred_check
      _
    $region3: #{tpu_custom_call.1} parent=1 // pred_check_branch
      %18 = sbr.rel (0) target = $region5
    $region4: #{tpu_custom_call.1} parent=1 // pred_region
      %s20 = ssub.s32 1024, 1024
      %21 = vsyncadd [#allocation4], %s20
      %s22 = sshll.u32 [#allocation3], 4
      %s23 = int_to_ptr.vmem [resolvable:$true] %s22
      %28 = dma.hbm_to_vmem [thread:$0]  %s0, 1024, %s23, [#allocation4], 64, 64, 4
    $region5: #{tpu_custom_call.1} parent=1 // pred_fallthru
      _
    // Predicated region
    $region6: #{tpu_custom_call.1} parent=1 // pred_check
      _
    $region7: #{tpu_custom_call.1} parent=1 // pred_check_branch
      %30 = sbr.rel (0) target = $region9
    $region8: #{tpu_custom_call.1} parent=1 // pred_region
      %s32 = ssub.s32 1024, 1024
      %33 = vsyncadd [#allocation7], %s32
      %s34 = sshll.u32 [#allocation6], 4
      %s35 = int_to_ptr.vmem [resolvable:$true] %s34
      %40 = dma.hbm_to_vmem [thread:$0]  %s1, 1024, %s35, [#allocation7], 64, 64, 4
    $region9: #{tpu_custom_call.1} parent=1 // pred_fallthru
      _
    // Predicated region
    $region10: #{tpu_custom_call.1} parent=1 // pred_check
      _
    $region11: #{tpu_custom_call.1} parent=1 // pred_check_branch
      %42 = sbr.rel (0) target = $region13
    $region12: #{tpu_custom_call.1} parent=1 // pred_region
      %s44 = ssub.s32 1024, 1024
      %45 = vsyncadd [#allocation7], %s44
      %s46 = sshll.u32 [#allocation8], 4
      %s47 = int_to_ptr.vmem [resolvable:$true] %s46
      %52 = dma.hbm_to_vmem [thread:$0]  %s2, 1024, %s47, [#allocation7], 64, 64, 4
    $region13: #{tpu_custom_call.1} parent=1 // pred_fallthru
      _
    // Predicated region
    $region14: #{tpu_custom_call.1} parent=1 // pred_check
      _
    $region15: #{tpu_custom_call.1} parent=1 // pred_check_branch
      %54 = sbr.rel (0) target = $region17
    $region16: #{tpu_custom_call.1} parent=1 // pred_region
      %s56 = ssub.s32 4096, 4096
      %57 = vsyncadd [#allocation10], %s56
      %s58 = sshll.u32 [#allocation9], 4
      %s59 = int_to_ptr.vmem [resolvable:$true] %s58
      %64 = dma.hbm_to_vmem [thread:$0]  %s3, 4096, %s59, [#allocation10], 128, 128, 8
    $region17: #{tpu_custom_call.1} parent=1 // pred_fallthru
      _
    // Predicated region
    $region18: #{tpu_custom_call.1} parent=1 // pred_check
      _
    $region19: #{tpu_custom_call.1} parent=1 // pred_check_branch
      %66 = sbr.rel (0) target = $region21
    $region20: #{tpu_custom_call.1} parent=1 // pred_region
      _
    $region21: #{tpu_custom_call.1} parent=1 // pred_fallthru
      _
    // Predicated region
    $region22: #{tpu_custom_call.1} parent=1 // pred_check
      _
    $region23: #{tpu_custom_call.1} parent=1 // pred_check_branch
      %68 = sbr.rel (0) target = $region25
    $region24: #{tpu_custom_call.1} parent=1 // pred_region
      %69 = dma.done [#allocation4], 1024
    $region25: #{tpu_custom_call.1} parent=1 // pred_fallthru
      _
    // Predicated region
    $region26: #{tpu_custom_call.1} parent=1 // pred_check
      _
    $region27: #{tpu_custom_call.1} parent=1 // pred_check_branch
      %71 = sbr.rel (0) target = $region29
    $region28: #{tpu_custom_call.1} parent=1 // pred_region
      %72 = dma.done [#allocation7], 1024
    $region29: #{tpu_custom_call.1} parent=1 // pred_fallthru
      _
    // Predicated region
    $region30: #{tpu_custom_call.1} parent=1 // pred_check
      _
    $region31: #{tpu_custom_call.1} parent=1 // pred_check_branch
      %74 = sbr.rel (0) target = $region33
    $region32: #{tpu_custom_call.1} parent=1 // pred_region
      %75 = dma.done [#allocation7], 1024
    $region33: #{tpu_custom_call.1} parent=1 // pred_fallthru
      _
    // Predicated region
    $region34: #{tpu_custom_call.1} parent=1 // pred_check
      _
    $region35: #{tpu_custom_call.1} parent=1 // pred_check_branch
      %77 = sbr.rel (0) target = $region37
    $region36: #{tpu_custom_call.1} parent=1 // pred_region
      %78 = dma.done [#allocation10], 4096
    $region37: #{tpu_custom_call.1} parent=1 // pred_fallthru
      _
    %p80 = scmp.eq.s32.totalorder 0, 0
    // Predicated region
    $region38: #{tpu_custom_call.1} parent=1 // pred_check
      %p81 = pneg %p80
    $region39: #{tpu_custom_call.1} parent=1 // pred_check_branch
      %83 = sbr.rel (%p81) target = $region41
    $region40: #{tpu_custom_call.1} parent=1 // pred_region
      %84 = vst [vmem:[#allocation2] sm:$0xff] 0.0
      %85 = vst [vmem:[#allocation2 + $0x8] sm:$0xff] 0.0
      %86 = vst [vmem:[#allocation2 + $0x10] sm:$0xff] 0.0
      %87 = vst [vmem:[#allocation2 + $0x18] sm:$0xff] 0.0
      %88 = vst [vmem:[#allocation2 + $0x20] sm:$0xff] 0.0
      %89 = vst [vmem:[#allocation2 + $0x28] sm:$0xff] 0.0
      %90 = vst [vmem:[#allocation2 + $0x30] sm:$0xff] 0.0
      %91 = vst [vmem:[#allocation2 + $0x38] sm:$0xff] 0.0
      %92 = vst [vmem:[#allocation2 + $0x40] sm:$0xff] 0.0
      %93 = vst [vmem:[#allocation2 + $0x48] sm:$0xff] 0.0
      %94 = vst [vmem:[#allocation2 + $0x50] sm:$0xff] 0.0
      %95 = vst [vmem:[#allocation2 + $0x58] sm:$0xff] 0.0
      %96 = vst [vmem:[#allocation2 + $0x60] sm:$0xff] 0.0
      %97 = vst [vmem:[#allocation2 + $0x68] sm:$0xff] 0.0
      %98 = vst [vmem:[#allocation2 + $0x70] sm:$0xff] 0.0
      %99 = vst [vmem:[#allocation2 + $0x78] sm:$0xff] 0.0
    $region41: #{tpu_custom_call.1} parent=1 // pred_fallthru
      _
    %s100 = smul.u32 0, 128
    %s101 = sshra.s32 %s100, 3
    %s102 = sand.u32 %s100, 7
    %s103 = smul.addr %s101, 4
    %s104 = scalar_lea.vmem [#allocation6], %s103
    %v105 = vld [vmem:[%s104] sm:$0xf]
    %v106 = vld [vmem:[%s104 + $0x4] sm:$0xf]
    %v107 = vld [vmem:[%s104 + $0x8] sm:$0xf]
    %v108 = vld [vmem:[%s104 + $0xc] sm:$0xf]
    %v109 = vld [vmem:[%s104 + $0x10] sm:$0xf]
    %v110 = vld [vmem:[%s104 + $0x14] sm:$0xf]
    %v111 = vld [vmem:[%s104 + $0x18] sm:$0xf]
    %v112 = vld [vmem:[%s104 + $0x1c] sm:$0xf]
    %v113 = vld [vmem:[%s104 + $0x20] sm:$0xf]
    %v114 = vld [vmem:[%s104 + $0x24] sm:$0xf]
    %v115 = vld [vmem:[%s104 + $0x28] sm:$0xf]
    %v116 = vld [vmem:[%s104 + $0x2c] sm:$0xf]
    %v117 = vld [vmem:[%s104 + $0x30] sm:$0xf]
    %v118 = vld [vmem:[%s104 + $0x34] sm:$0xf]
    %v119 = vld [vmem:[%s104 + $0x38] sm:$0xf]
    %v120 = vld [vmem:[%s104 + $0x3c] sm:$0xf]
    %v121 = vld [vmem:[#allocation2] sm:$0xff]
    %v122 = vld [vmem:[#allocation2 + $0x8] sm:$0xff]
    %v123 = vld [vmem:[#allocation2 + $0x10] sm:$0xff]
    %v124 = vld [vmem:[#allocation2 + $0x18] sm:$0xff]
    %v125 = vld [vmem:[#allocation2 + $0x20] sm:$0xff]
    %v126 = vld [vmem:[#allocation2 + $0x28] sm:$0xff]
    %v127 = vld [vmem:[#allocation2 + $0x30] sm:$0xff]
    %v128 = vld [vmem:[#allocation2 + $0x38] sm:$0xff]
    %v129 = vld [vmem:[#allocation2 + $0x40] sm:$0xff]
    %v130 = vld [vmem:[#allocation2 + $0x48] sm:$0xff]
    %v131 = vld [vmem:[#allocation2 + $0x50] sm:$0xff]
    %v132 = vld [vmem:[#allocation2 + $0x58] sm:$0xff]
    %v133 = vld [vmem:[#allocation2 + $0x60] sm:$0xff]
    %v134 = vld [vmem:[#allocation2 + $0x68] sm:$0xff]
    %v135 = vld [vmem:[#allocation2 + $0x70] sm:$0xff]
    %v136 = vld [vmem:[#allocation2 + $0x78] sm:$0xff]
    %v137 = vld [vmem:[#allocation3] sm:$0xf]
    %v138 = vld [vmem:[#allocation3 + $0x4] sm:$0xf]
    %v139 = vld [vmem:[#allocation3 + $0x8] sm:$0xf]
    %v140 = vld [vmem:[#allocation3 + $0xc] sm:$0xf]
    %v141 = vld [vmem:[#allocation3 + $0x10] sm:$0xf]
    %v142 = vld [vmem:[#allocation3 + $0x14] sm:$0xf]
    %v143 = vld [vmem:[#allocation3 + $0x18] sm:$0xf]
    %v144 = vld [vmem:[#allocation3 + $0x1c] sm:$0xf]
    %v145 = vld [vmem:[#allocation3 + $0x20] sm:$0xf]
    %v146 = vld [vmem:[#allocation3 + $0x24] sm:$0xf]
    %v147 = vld [vmem:[#allocation3 + $0x28] sm:$0xf]
    %v148 = vld [vmem:[#allocation3 + $0x2c] sm:$0xf]
    %v149 = vld [vmem:[#allocation3 + $0x30] sm:$0xf]
    %v150 = vld [vmem:[#allocation3 + $0x34] sm:$0xf]
    %v151 = vld [vmem:[#allocation3 + $0x38] sm:$0xf]
    %v152 = vld [vmem:[#allocation3 + $0x3c] sm:$0xf]
    %v169 = vunpack.c.l.b16 %v137
    %v170 = vunpack.c.l.b16 %v138
    %v171 = vunpack.c.l.b16 %v139
    %v172 = vunpack.c.l.b16 %v140
    %v173 = vunpack.c.l.b16 %v141
    %v174 = vunpack.c.l.b16 %v142
    %v175 = vunpack.c.l.b16 %v143
    %v176 = vunpack.c.l.b16 %v144
    %v177 = vunpack.c.l.b16 %v145
    %v178 = vunpack.c.l.b16 %v146
    %v179 = vunpack.c.l.b16 %v147
    %v180 = vunpack.c.l.b16 %v148
    %v181 = vunpack.c.l.b16 %v149
    %v182 = vunpack.c.l.b16 %v150
    %v183 = vunpack.c.l.b16 %v151
    %v184 = vunpack.c.l.b16 %v152
    %v185 = vpack.c.b16 %v170, %v169
    %v186 = vpack.c.b16 %v172, %v171
    %v187 = vpack.c.b16 %v174, %v173
    %v188 = vpack.c.b16 %v176, %v175
    %v189 = vpack.c.b16 %v178, %v177
    %v190 = vpack.c.b16 %v180, %v179
    %v191 = vpack.c.b16 %v182, %v181
    %v192 = vpack.c.b16 %v184, %v183
    %v217 = vunpack.c.l.b16 %v105
    %v218 = vunpack.c.l.b16 %v106
    %v219 = vunpack.c.l.b16 %v107
    %v220 = vunpack.c.l.b16 %v108
    %v221 = vunpack.c.l.b16 %v109
    %v222 = vunpack.c.l.b16 %v110
    %v223 = vunpack.c.l.b16 %v111
    %v224 = vunpack.c.l.b16 %v112
    %v225 = vunpack.c.l.b16 %v113
    %v226 = vunpack.c.l.b16 %v114
    %v227 = vunpack.c.l.b16 %v115
    %v228 = vunpack.c.l.b16 %v116
    %v229 = vunpack.c.l.b16 %v117
    %v230 = vunpack.c.l.b16 %v118
    %v231 = vunpack.c.l.b16 %v119
    %v232 = vunpack.c.l.b16 %v120
    %v233 = vpack.c.b16 %v218, %v217
    %v234 = vpack.c.b16 %v220, %v219
    %v235 = vpack.c.b16 %v222, %v221
    %v236 = vpack.c.b16 %v224, %v223
    %v237 = vpack.c.b16 %v226, %v225
    %v238 = vpack.c.b16 %v228, %v227
    %v239 = vpack.c.b16 %v230, %v229
    %v240 = vpack.c.b16 %v232, %v231
    %249 = vmatprep.subr.bf16.mxu0 0
    %250 = vmatpush1.bf16.msra.mxu0 %v233
    %251 = vmatprep.subr.bf16.mxu0 0
    %252 = vmatpush1.bf16.msra.mxu0 %v234
    %253 = vmatprep.subr.bf16.mxu0 0
    %254 = vmatpush1.bf16.msra.mxu0 %v235
    %255 = vmatprep.subr.bf16.mxu0 0
    %256 = vmatpush1.bf16.msra.mxu0 %v236
    %257 = vmatprep.subr.bf16.mxu0 0
    %258 = vmatpush1.bf16.msra.mxu0 %v237
    %259 = vmatprep.subr.bf16.mxu0 0
    %260 = vmatpush1.bf16.msra.mxu0 %v238
    %261 = vmatprep.subr.bf16.mxu0 0
    %262 = vmatpush1.bf16.msra.mxu0 %v239
    %263 = vmatprep.subr.bf16.mxu0 0
    %264 = vmatpush1.bf16.msra.mxu0 %v240
    %265 = vmatprep.subr.bf16.mxu0 0
    %266 = vmatpush1.bf16.msra.mxu0 0
    %267 = vmatprep.subr.bf16.mxu0 0
    %268 = vmatpush1.bf16.msra.mxu0 0
    %269 = vmatprep.subr.bf16.mxu0 0
    %270 = vmatpush1.bf16.msra.mxu0 0
    %271 = vmatprep.subr.bf16.mxu0 0
    %272 = vmatpush1.bf16.msra.mxu0 0
    %273 = vmatprep.subr.bf16.mxu0 0
    %274 = vmatpush1.bf16.msra.mxu0 0
    %275 = vmatprep.subr.bf16.mxu0 0
    %276 = vmatpush1.bf16.msra.mxu0 0
    %277 = vmatprep.subr.bf16.mxu0 0
    %278 = vmatpush1.bf16.msra.mxu0 0
    %279 = vmatprep.subr.bf16.mxu0 0
    %280 = vmatpush1.bf16.msra.mxu0 0
    %281 = vmatprep.mubr.bf16.mxu0 0
    %282 = vmatmul.mubr.bf16.gmra.mrb[0].mxu0 %v185
    %v283 = vpop.f32.mrb[0].mxu0
    %v284 = vadd.f32 0.0, %v283
    %v285 = vpop.f32.mrb[0].mxu0
    %v286 = vpop.f32.mrb[0].mxu0
    %v287 = vadd.f32 0.0, %v286
    %v288 = vpop.f32.mrb[0].mxu0
    %289 = vmatprep.mubr.bf16.mxu0 0
    %290 = vmatmul.mubr.bf16.gmra.mrb[0].mxu0 %v186
    %v291 = vpop.f32.mrb[0].mxu0
    %v292 = vadd.f32 0.0, %v291
    %v293 = vpop.f32.mrb[0].mxu0
    %v294 = vpop.f32.mrb[0].mxu0
    %v295 = vadd.f32 0.0, %v294
    %v296 = vpop.f32.mrb[0].mxu0
    %297 = vmatprep.mubr.bf16.mxu0 0
    %298 = vmatmul.mubr.bf16.gmra.mrb[0].mxu0 %v187
    %v299 = vpop.f32.mrb[0].mxu0
    %v300 = vadd.f32 0.0, %v299
    %v301 = vpop.f32.mrb[0].mxu0
    %v302 = vpop.f32.mrb[0].mxu0
    %v303 = vadd.f32 0.0, %v302
    %v304 = vpop.f32.mrb[0].mxu0
    %305 = vmatprep.mubr.bf16.mxu0 0
    %306 = vmatmul.mubr.bf16.gmra.mrb[0].mxu0 %v188
    %v307 = vpop.f32.mrb[0].mxu0
    %v308 = vadd.f32 0.0, %v307
    %v309 = vpop.f32.mrb[0].mxu0
    %v310 = vpop.f32.mrb[0].mxu0
    %v311 = vadd.f32 0.0, %v310
    %v312 = vpop.f32.mrb[0].mxu0
    %313 = vmatprep.mubr.bf16.mxu0 0
    %314 = vmatmul.mubr.bf16.gmra.mrb[0].mxu0 %v189
    %v315 = vpop.f32.mrb[0].mxu0
    %v316 = vadd.f32 0.0, %v315
    %v317 = vpop.f32.mrb[0].mxu0
    %v318 = vpop.f32.mrb[0].mxu0
    %v319 = vadd.f32 0.0, %v318
    %v320 = vpop.f32.mrb[0].mxu0
    %321 = vmatprep.mubr.bf16.mxu0 0
    %322 = vmatmul.mubr.bf16.gmra.mrb[0].mxu0 %v190
    %v323 = vpop.f32.mrb[0].mxu0
    %v324 = vadd.f32 0.0, %v323
    %v325 = vpop.f32.mrb[0].mxu0
    %v326 = vpop.f32.mrb[0].mxu0
    %v327 = vadd.f32 0.0, %v326
    %v328 = vpop.f32.mrb[0].mxu0
    %329 = vmatprep.mubr.bf16.mxu0 0
    %330 = vmatmul.mubr.bf16.gmra.mrb[0].mxu0 %v191
    %v331 = vpop.f32.mrb[0].mxu0
    %v332 = vadd.f32 0.0, %v331
    %v333 = vpop.f32.mrb[0].mxu0
    %v334 = vpop.f32.mrb[0].mxu0
    %v335 = vadd.f32 0.0, %v334
    %v336 = vpop.f32.mrb[0].mxu0
    %337 = vmatprep.mubr.bf16.mxu0 0
    %338 = vmatmul.mubr.bf16.gmra.mrb[0].mxu0 %v192
    %v339 = vpop.f32.mrb[0].mxu0
    %v340 = vadd.f32 0.0, %v339
    %v341 = vpop.f32.mrb[0].mxu0
    %v342 = vpop.f32.mrb[0].mxu0
    %v343 = vadd.f32 0.0, %v342
    %v344 = vpop.f32.mrb[0].mxu0
    %345 = vdwg.mxu0
    %v346 = vadd.f32 %v121, %v284
    %v347 = vadd.f32 %v122, %v287
    %v348 = vadd.f32 %v123, %v292
    %v349 = vadd.f32 %v124, %v295
    %v350 = vadd.f32 %v125, %v300
    %v351 = vadd.f32 %v126, %v303
    %v352 = vadd.f32 %v127, %v308
    %v353 = vadd.f32 %v128, %v311
    %v354 = vadd.f32 %v129, %v316
    %v355 = vadd.f32 %v130, %v319
    %v356 = vadd.f32 %v131, %v324
    %v357 = vadd.f32 %v132, %v327
    %v358 = vadd.f32 %v133, %v332
    %v359 = vadd.f32 %v134, %v335
    %v360 = vadd.f32 %v135, %v340
    %v361 = vadd.f32 %v136, %v343
    %362 = vst [vmem:[#allocation2] sm:$0xff] %v346
    %363 = vst [vmem:[#allocation2 + $0x8] sm:$0xff] %v347
    %364 = vst [vmem:[#allocation2 + $0x10] sm:$0xff] %v348
    %365 = vst [vmem:[#allocation2 + $0x18] sm:$0xff] %v349
    %366 = vst [vmem:[#allocation2 + $0x20] sm:$0xff] %v350
    %367 = vst [vmem:[#allocation2 + $0x28] sm:$0xff] %v351
    %368 = vst [vmem:[#allocation2 + $0x30] sm:$0xff] %v352
    %369 = vst [vmem:[#allocation2 + $0x38] sm:$0xff] %v353
    %370 = vst [vmem:[#allocation2 + $0x40] sm:$0xff] %v354
    %371 = vst [vmem:[#allocation2 + $0x48] sm:$0xff] %v355
    %372 = vst [vmem:[#allocation2 + $0x50] sm:$0xff] %v356
    %373 = vst [vmem:[#allocation2 + $0x58] sm:$0xff] %v357
    %374 = vst [vmem:[#allocation2 + $0x60] sm:$0xff] %v358
    %375 = vst [vmem:[#allocation2 + $0x68] sm:$0xff] %v359
    %376 = vst [vmem:[#allocation2 + $0x70] sm:$0xff] %v360
    %377 = vst [vmem:[#allocation2 + $0x78] sm:$0xff] %v361
    // Predicated region
    $region42: #{tpu_custom_call.1} parent=1 // pred_check
      %p378 = pneg %p80
    $region43: #{tpu_custom_call.1} parent=1 // pred_check_branch
      %380 = sbr.rel (%p378) target = $region45
    $region44: #{tpu_custom_call.1} parent=1 // pred_region
      %v381 = vld [vmem:[#allocation8] sm:$0xf]
      %v382 = vld [vmem:[#allocation8 + $0x4] sm:$0xf]
      %v383 = vld [vmem:[#allocation8 + $0x8] sm:$0xf]
      %v384 = vld [vmem:[#allocation8 + $0xc] sm:$0xf]
      %v385 = vld [vmem:[#allocation8 + $0x10] sm:$0xf]
      %v386 = vld [vmem:[#allocation8 + $0x14] sm:$0xf]
      %v387 = vld [vmem:[#allocation8 + $0x18] sm:$0xf]
      %v388 = vld [vmem:[#allocation8 + $0x1c] sm:$0xf]
      %v389 = vld [vmem:[#allocation8 + $0x20] sm:$0xf]
      %v390 = vld [vmem:[#allocation8 + $0x24] sm:$0xf]
      %v391 = vld [vmem:[#allocation8 + $0x28] sm:$0xf]
      %v392 = vld [vmem:[#allocation8 + $0x2c] sm:$0xf]
      %v393 = vld [vmem:[#allocation8 + $0x30] sm:$0xf]
      %v394 = vld [vmem:[#allocation8 + $0x34] sm:$0xf]
      %v395 = vld [vmem:[#allocation8 + $0x38] sm:$0xf]
      %v396 = vld [vmem:[#allocation8 + $0x3c] sm:$0xf]
      %v397 = vunpack.c.l.bf16 %v381
      %v398 = vunpack.c.l.bf16 %v382
      %v399 = vunpack.c.l.bf16 %v383
      %v400 = vunpack.c.l.bf16 %v384
      %v401 = vunpack.c.l.bf16 %v385
      %v402 = vunpack.c.l.bf16 %v386
      %v403 = vunpack.c.l.bf16 %v387
      %v404 = vunpack.c.l.bf16 %v388
      %v405 = vunpack.c.l.bf16 %v389
      %v406 = vunpack.c.l.bf16 %v390
      %v407 = vunpack.c.l.bf16 %v391
      %v408 = vunpack.c.l.bf16 %v392
      %v409 = vunpack.c.l.bf16 %v393
      %v410 = vunpack.c.l.bf16 %v394
      %v411 = vunpack.c.l.bf16 %v395
      %v412 = vunpack.c.l.bf16 %v396
      %v413 = vld [vmem:[#allocation2] sm:$0xff]
      %v414 = vld [vmem:[#allocation2 + $0x8] sm:$0xff]
      %v415 = vld [vmem:[#allocation2 + $0x10] sm:$0xff]
      %v416 = vld [vmem:[#allocation2 + $0x18] sm:$0xff]
      %v417 = vld [vmem:[#allocation2 + $0x20] sm:$0xff]
      %v418 = vld [vmem:[#allocation2 + $0x28] sm:$0xff]
      %v419 = vld [vmem:[#allocation2 + $0x30] sm:$0xff]
      %v420 = vld [vmem:[#allocation2 + $0x38] sm:$0xff]
      %v421 = vld [vmem:[#allocation2 + $0x40] sm:$0xff]
      %v422 = vld [vmem:[#allocation2 + $0x48] sm:$0xff]
      %v423 = vld [vmem:[#allocation2 + $0x50] sm:$0xff]
      %v424 = vld [vmem:[#allocation2 + $0x58] sm:$0xff]
      %v425 = vld [vmem:[#allocation2 + $0x60] sm:$0xff]
      %v426 = vld [vmem:[#allocation2 + $0x68] sm:$0xff]
      %v427 = vld [vmem:[#allocation2 + $0x70] sm:$0xff]
      %v428 = vld [vmem:[#allocation2 + $0x78] sm:$0xff]
      %v429 = vadd.f32 %v413, %v397
      %v430 = vadd.f32 %v414, %v398
      %v431 = vadd.f32 %v415, %v399
      %v432 = vadd.f32 %v416, %v400
      %v433 = vadd.f32 %v417, %v401
      %v434 = vadd.f32 %v418, %v402
      %v435 = vadd.f32 %v419, %v403
      %v436 = vadd.f32 %v420, %v404
      %v437 = vadd.f32 %v421, %v405
      %v438 = vadd.f32 %v422, %v406
      %v439 = vadd.f32 %v423, %v407
      %v440 = vadd.f32 %v424, %v408
      %v441 = vadd.f32 %v425, %v409
      %v442 = vadd.f32 %v426, %v410
      %v443 = vadd.f32 %v427, %v411
      %v444 = vadd.f32 %v428, %v412
      %v445 = vmul.f32 %v413, %v397
      %v446 = vmul.f32 %v414, %v398
      %v447 = vmul.f32 %v415, %v399
      %v448 = vmul.f32 %v416, %v400
      %v449 = vmul.f32 %v417, %v401
      %v450 = vmul.f32 %v418, %v402
      %v451 = vmul.f32 %v419, %v403
      %v452 = vmul.f32 %v420, %v404
      %v453 = vmul.f32 %v421, %v405
      %v454 = vmul.f32 %v422, %v406
      %v455 = vmul.f32 %v423, %v407
      %v456 = vmul.f32 %v424, %v408
      %v457 = vmul.f32 %v425, %v409
      %v458 = vmul.f32 %v426, %v410
      %v459 = vmul.f32 %v427, %v411
      %v460 = vmul.f32 %v428, %v412
      %v461 = vld [vmem:[#allocation9] sm:$0xff]
      %v462 = vld [vmem:[#allocation9 + $0x8] sm:$0xff]
      %v463 = vld [vmem:[#allocation9 + $0x10] sm:$0xff]
      %v464 = vld [vmem:[#allocation9 + $0x18] sm:$0xff]
      %v465 = vld [vmem:[#allocation9 + $0x20] sm:$0xff]
      %v466 = vld [vmem:[#allocation9 + $0x28] sm:$0xff]
      %v467 = vld [vmem:[#allocation9 + $0x30] sm:$0xff]
      %v468 = vld [vmem:[#allocation9 + $0x38] sm:$0xff]
      %v469 = vld [vmem:[#allocation9 + $0x40] sm:$0xff]
      %v470 = vld [vmem:[#allocation9 + $0x48] sm:$0xff]
      %v471 = vld [vmem:[#allocation9 + $0x50] sm:$0xff]
      %v472 = vld [vmem:[#allocation9 + $0x58] sm:$0xff]
      %v473 = vld [vmem:[#allocation9 + $0x60] sm:$0xff]
      %v474 = vld [vmem:[#allocation9 + $0x68] sm:$0xff]
      %v475 = vld [vmem:[#allocation9 + $0x70] sm:$0xff]
      %v476 = vld [vmem:[#allocation9 + $0x78] sm:$0xff]
      %v477 = vld [vmem:[#allocation9 + $0x80] sm:$0xff]
      %v478 = vld [vmem:[#allocation9 + $0x88] sm:$0xff]
      %v479 = vld [vmem:[#allocation9 + $0x90] sm:$0xff]
      %v480 = vld [vmem:[#allocation9 + $0x98] sm:$0xff]
      %v481 = vld [vmem:[#allocation9 + $0xa0] sm:$0xff]
      %v482 = vld [vmem:[#allocation9 + $0xa8] sm:$0xff]
      %v483 = vld [vmem:[#allocation9 + $0xb0] sm:$0xff]
      %v484 = vld [vmem:[#allocation9 + $0xb8] sm:$0xff]
      %v485 = vld [vmem:[#allocation9 + $0xc0] sm:$0xff]
      %v486 = vld [vmem:[#allocation9 + $0xc8] sm:$0xff]
      %v487 = vld [vmem:[#allocation9 + $0xd0] sm:$0xff]
      %v488 = vld [vmem:[#allocation9 + $0xd8] sm:$0xff]
      %v489 = vld [vmem:[#allocation9 + $0xe0] sm:$0xff]
      %v490 = vld [vmem:[#allocation9 + $0xe8] sm:$0xff]
      %v491 = vld [vmem:[#allocation9 + $0xf0] sm:$0xff]
      %v492 = vld [vmem:[#allocation9 + $0xf8] sm:$0xff]
      %v493 = vld [vmem:[%s4] sm:$0x1]
      %v495 = vlaneseq
      %v496 = vshrl.u32 %v495, 7
      %v497 = vsub.s32 0, %v496
      %v498 = vrot.slane %v493, %v497
      %500 = vmatprep.subr.mxu0 0.0
      %501 = vmatpush1.msra.mxu0 %v461
      %502 = vmatprep.subr.mxu0 0.0
      %503 = vmatpush1.msra.mxu0 %v462
      %504 = vmatprep.subr.mxu0 0.0
      %505 = vmatpush1.msra.mxu0 %v463
      %506 = vmatprep.subr.mxu0 0.0
      %507 = vmatpush1.msra.mxu0 %v464
      %508 = vmatprep.subr.mxu0 0.0
      %509 = vmatpush1.msra.mxu0 %v465
      %510 = vmatprep.subr.mxu0 0.0
      %511 = vmatpush1.msra.mxu0 %v466
      %512 = vmatprep.subr.mxu0 0.0
      %513 = vmatpush1.msra.mxu0 %v467
      %514 = vmatprep.subr.mxu0 0.0
      %515 = vmatpush1.msra.mxu0 %v468
      %516 = vmatprep.subr.mxu0 0.0
      %517 = vmatpush1.msra.mxu0 %v469
      %518 = vmatprep.subr.mxu0 0.0
      %519 = vmatpush1.msra.mxu0 %v470
      %520 = vmatprep.subr.mxu0 0.0
      %521 = vmatpush1.msra.mxu0 %v471
      %522 = vmatprep.subr.mxu0 0.0
      %523 = vmatpush1.msra.mxu0 %v472
      %524 = vmatprep.subr.mxu0 0.0
      %525 = vmatpush1.msra.mxu0 %v473
      %526 = vmatprep.subr.mxu0 0.0
      %527 = vmatpush1.msra.mxu0 %v474
      %528 = vmatprep.subr.mxu0 0.0
      %529 = vmatpush1.msra.mxu0 %v475
      %530 = vmatprep.subr.mxu0 0.0
      %531 = vmatpush1.msra.mxu0 %v476
      %532 = vmatprep.subr.mxu0 0.0
      %533 = vmatpush1.msra.mxu0 %v477
      %534 = vmatprep.subr.mxu0 0.0
      %535 = vmatpush1.msra.mxu0 %v478
      %536 = vmatprep.subr.mxu0 0.0
      %537 = vmatpush1.msra.mxu0 %v479
      %538 = vmatprep.subr.mxu0 0.0
      %539 = vmatpush1.msra.mxu0 %v480
      %540 = vmatprep.subr.mxu0 0.0
      %541 = vmatpush1.msra.mxu0 %v481
      %542 = vmatprep.subr.mxu0 0.0
      %543 = vmatpush1.msra.mxu0 %v482
      %544 = vmatprep.subr.mxu0 0.0
      %545 = vmatpush1.msra.mxu0 %v483
      %546 = vmatprep.subr.mxu0 0.0
      %547 = vmatpush1.msra.mxu0 %v484
      %548 = vmatprep.subr.mxu0 0.0
      %549 = vmatpush1.msra.mxu0 %v485
      %550 = vmatprep.subr.mxu0 0.0
      %551 = vmatpush1.msra.mxu0 %v486
      %552 = vmatprep.subr.mxu0 0.0
      %553 = vmatpush1.msra.mxu0 %v487
      %554 = vmatprep.subr.mxu0 0.0
      %555 = vmatpush1.msra.mxu0 %v488
      %556 = vmatprep.subr.mxu0 0.0
      %557 = vmatpush1.msra.mxu0 %v489
      %558 = vmatprep.subr.mxu0 0.0
      %559 = vmatpush1.msra.mxu0 %v490
      %560 = vmatprep.subr.mxu0 0.0
      %561 = vmatpush1.msra.mxu0 %v491
      %562 = vmatprep.subr.mxu0 0.0
      %563 = vmatpush1.msra.mxu0 %v492
      %564 = vmatprep.mubr.f32.mxu0 %v445
      %565 = vmatmul.mubr.f32.gmra.mrb[0].mxu0 %v429
      %v566 = vpop.f32.mrb[0].mxu0
      %v567 = vadd.f32 %v498, %v566
      %v568 = vpop.f32.mrb[0].mxu0
      %569 = vmatprep.mubr.f32.mxu0 %v446
      %570 = vmatmul.mubr.f32.gmra.mrb[0].mxu0 %v430
      %v571 = vpop.f32.mrb[0].mxu0
      %v572 = vadd.f32 %v498, %v571
      %v573 = vpop.f32.mrb[0].mxu0
      %574 = vmatprep.mubr.f32.mxu0 %v447
      %575 = vmatmul.mubr.f32.gmra.mrb[0].mxu0 %v431
      %v576 = vpop.f32.mrb[0].mxu0
      %v577 = vadd.f32 %v498, %v576
      %v578 = vpop.f32.mrb[0].mxu0
      %579 = vmatprep.mubr.f32.mxu0 %v448
      %580 = vmatmul.mubr.f32.gmra.mrb[0].mxu0 %v432
      %v581 = vpop.f32.mrb[0].mxu0
      %v582 = vadd.f32 %v498, %v581
      %v583 = vpop.f32.mrb[0].mxu0
      %584 = vmatprep.mubr.f32.mxu0 %v449
      %585 = vmatmul.mubr.f32.gmra.mrb[0].mxu0 %v433
      %v586 = vpop.f32.mrb[0].mxu0
      %v587 = vadd.f32 %v498, %v586
      %v588 = vpop.f32.mrb[0].mxu0
      %589 = vmatprep.mubr.f32.mxu0 %v450
      %590 = vmatmul.mubr.f32.gmra.mrb[0].mxu0 %v434
      %v591 = vpop.f32.mrb[0].mxu0
      %v592 = vadd.f32 %v498, %v591
      %v593 = vpop.f32.mrb[0].mxu0
      %594 = vmatprep.mubr.f32.mxu0 %v451
      %595 = vmatmul.mubr.f32.gmra.mrb[0].mxu0 %v435
      %v596 = vpop.f32.mrb[0].mxu0
      %v597 = vadd.f32 %v498, %v596
      %v598 = vpop.f32.mrb[0].mxu0
      %599 = vmatprep.mubr.f32.mxu0 %v452
      %600 = vmatmul.mubr.f32.gmra.mrb[0].mxu0 %v436
      %v601 = vpop.f32.mrb[0].mxu0
      %v602 = vadd.f32 %v498, %v601
      %v603 = vpop.f32.mrb[0].mxu0
      %604 = vmatprep.mubr.f32.mxu0 %v453
      %605 = vmatmul.mubr.f32.gmra.mrb[0].mxu0 %v437
      %v606 = vpop.f32.mrb[0].mxu0
      %v607 = vadd.f32 %v498, %v606
      %v608 = vpop.f32.mrb[0].mxu0
      %609 = vmatprep.mubr.f32.mxu0 %v454
      %610 = vmatmul.mubr.f32.gmra.mrb[0].mxu0 %v438
      %v611 = vpop.f32.mrb[0].mxu0
      %v612 = vadd.f32 %v498, %v611
      %v613 = vpop.f32.mrb[0].mxu0
      %614 = vmatprep.mubr.f32.mxu0 %v455
      %615 = vmatmul.mubr.f32.gmra.mrb[0].mxu0 %v439
      %v616 = vpop.f32.mrb[0].mxu0
      %v617 = vadd.f32 %v498, %v616
      %v618 = vpop.f32.mrb[0].mxu0
      %619 = vmatprep.mubr.f32.mxu0 %v456
      %620 = vmatmul.mubr.f32.gmra.mrb[0].mxu0 %v440
      %v621 = vpop.f32.mrb[0].mxu0
      %v622 = vadd.f32 %v498, %v621
      %v623 = vpop.f32.mrb[0].mxu0
      %624 = vmatprep.mubr.f32.mxu0 %v457
      %625 = vmatmul.mubr.f32.gmra.mrb[0].mxu0 %v441
      %v626 = vpop.f32.mrb[0].mxu0
      %v627 = vadd.f32 %v498, %v626
      %v628 = vpop.f32.mrb[0].mxu0
      %629 = vmatprep.mubr.f32.mxu0 %v458
      %630 = vmatmul.mubr.f32.gmra.mrb[0].mxu0 %v442
      %v631 = vpop.f32.mrb[0].mxu0
      %v632 = vadd.f32 %v498, %v631
      %v633 = vpop.f32.mrb[0].mxu0
      %634 = vmatprep.mubr.f32.mxu0 %v459
      %635 = vmatmul.mubr.f32.gmra.mrb[0].mxu0 %v443
      %v636 = vpop.f32.mrb[0].mxu0
      %v637 = vadd.f32 %v498, %v636
      %v638 = vpop.f32.mrb[0].mxu0
      %639 = vmatprep.mubr.f32.mxu0 %v460
      %640 = vmatmul.mubr.f32.gmra.mrb[0].mxu0 %v444
      %v641 = vpop.f32.mrb[0].mxu0
      %v642 = vadd.f32 %v498, %v641
      %v643 = vpop.f32.mrb[0].mxu0
      %644 = vdwg.mxu0
      %vm645 = vcmp.gt.f32.partialorder %v567, 0.0
      %vm646 = vcmp.gt.f32.partialorder %v572, 0.0
      %vm647 = vcmp.gt.f32.partialorder %v577, 0.0
      %vm648 = vcmp.gt.f32.partialorder %v582, 0.0
      %vm649 = vcmp.gt.f32.partialorder %v587, 0.0
      %vm650 = vcmp.gt.f32.partialorder %v592, 0.0
      %vm651 = vcmp.gt.f32.partialorder %v597, 0.0
      %vm652 = vcmp.gt.f32.partialorder %v602, 0.0
      %vm653 = vcmp.gt.f32.partialorder %v607, 0.0
      %vm654 = vcmp.gt.f32.partialorder %v612, 0.0
      %vm655 = vcmp.gt.f32.partialorder %v617, 0.0
      %vm656 = vcmp.gt.f32.partialorder %v622, 0.0
      %vm657 = vcmp.gt.f32.partialorder %v627, 0.0
      %vm658 = vcmp.gt.f32.partialorder %v632, 0.0
      %vm659 = vcmp.gt.f32.partialorder %v637, 0.0
      %vm660 = vcmp.gt.f32.partialorder %v642, 0.0
      %v661 = vmul.f32 %v567, 0.2
      %v662 = vmul.f32 %v572, 0.2
      %v663 = vmul.f32 %v577, 0.2
      %v664 = vmul.f32 %v582, 0.2
      %v665 = vmul.f32 %v587, 0.2
      %v666 = vmul.f32 %v592, 0.2
      %v667 = vmul.f32 %v597, 0.2
      %v668 = vmul.f32 %v602, 0.2
      %v669 = vmul.f32 %v607, 0.2
      %v670 = vmul.f32 %v612, 0.2
      %v671 = vmul.f32 %v617, 0.2
      %v672 = vmul.f32 %v622, 0.2
      %v673 = vmul.f32 %v627, 0.2
      %v674 = vmul.f32 %v632, 0.2
      %v675 = vmul.f32 %v637, 0.2
      %v676 = vmul.f32 %v642, 0.2
      %v677 = vsel %vm645, %v567, %v661
      %v678 = vsel %vm646, %v572, %v662
      %v679 = vsel %vm647, %v577, %v663
      %v680 = vsel %vm648, %v582, %v664
      %v681 = vsel %vm649, %v587, %v665
      %v682 = vsel %vm650, %v592, %v666
      %v683 = vsel %vm651, %v597, %v667
      %v684 = vsel %vm652, %v602, %v668
      %v685 = vsel %vm653, %v607, %v669
      %v686 = vsel %vm654, %v612, %v670
      %v687 = vsel %vm655, %v617, %v671
      %v688 = vsel %vm656, %v622, %v672
      %v689 = vsel %vm657, %v627, %v673
      %v690 = vsel %vm658, %v632, %v674
      %v691 = vsel %vm659, %v637, %v675
      %v692 = vsel %vm660, %v642, %v676
      %v693 = vmul.f32 %v677, %v677
      %v694 = vmul.f32 %v678, %v678
      %v695 = vmul.f32 %v679, %v679
      %v696 = vmul.f32 %v680, %v680
      %v697 = vmul.f32 %v681, %v681
      %v698 = vmul.f32 %v682, %v682
      %v699 = vmul.f32 %v683, %v683
      %v700 = vmul.f32 %v684, %v684
      %v701 = vmul.f32 %v685, %v685
      %v702 = vmul.f32 %v686, %v686
      %v703 = vmul.f32 %v687, %v687
      %v704 = vmul.f32 %v688, %v688
      %v705 = vmul.f32 %v689, %v689
      %v706 = vmul.f32 %v690, %v690
      %v707 = vmul.f32 %v691, %v691
      %v708 = vmul.f32 %v692, %v692
      %709 = vadd.xlane.f32.xlu0 %v693
      %v710 = vpop.xlane.xlu0 %709
      %711 = vadd.xlane.f32.xlu0 %v694
      %v712 = vpop.xlane.xlu0 %711
      %713 = vadd.xlane.f32.xlu0 %v695
      %v714 = vpop.xlane.xlu0 %713
      %715 = vadd.xlane.f32.xlu0 %v696
      %v716 = vpop.xlane.xlu0 %715
      %717 = vadd.xlane.f32.xlu0 %v697
      %v718 = vpop.xlane.xlu0 %717
      %719 = vadd.xlane.f32.xlu0 %v698
      %v720 = vpop.xlane.xlu0 %719
      %721 = vadd.xlane.f32.xlu0 %v699
      %v722 = vpop.xlane.xlu0 %721
      %723 = vadd.xlane.f32.xlu0 %v700
      %v724 = vpop.xlane.xlu0 %723
      %725 = vadd.xlane.f32.xlu0 %v701
      %v726 = vpop.xlane.xlu0 %725
      %727 = vadd.xlane.f32.xlu0 %v702
      %v728 = vpop.xlane.xlu0 %727
      %729 = vadd.xlane.f32.xlu0 %v703
      %v730 = vpop.xlane.xlu0 %729
      %731 = vadd.xlane.f32.xlu0 %v704
      %v732 = vpop.xlane.xlu0 %731
      %733 = vadd.xlane.f32.xlu0 %v705
      %v734 = vpop.xlane.xlu0 %733
      %735 = vadd.xlane.f32.xlu0 %v706
      %v736 = vpop.xlane.xlu0 %735
      %737 = vadd.xlane.f32.xlu0 %v707
      %v738 = vpop.xlane.xlu0 %737
      %739 = vadd.xlane.f32.xlu0 %v708
      %v740 = vpop.xlane.xlu0 %739
      %v741 = vmax.f32 %v710, 1e-24
      %v742 = vmax.f32 %v712, 1e-24
      %v743 = vmax.f32 %v714, 1e-24
      %v744 = vmax.f32 %v716, 1e-24
      %v745 = vmax.f32 %v718, 1e-24
      %v746 = vmax.f32 %v720, 1e-24
      %v747 = vmax.f32 %v722, 1e-24
      %v748 = vmax.f32 %v724, 1e-24
      %v749 = vmax.f32 %v726, 1e-24
      %v750 = vmax.f32 %v728, 1e-24
      %v751 = vmax.f32 %v730, 1e-24
      %v752 = vmax.f32 %v732, 1e-24
      %v753 = vmax.f32 %v734, 1e-24
      %v754 = vmax.f32 %v736, 1e-24
      %v755 = vmax.f32 %v738, 1e-24
      %v756 = vmax.f32 %v740, 1e-24
      %v757 = vrsqrt.pop %v741
      %v758 = vrsqrt.pop %v742
      %v759 = vrsqrt.pop %v743
      %v760 = vrsqrt.pop %v744
      %v761 = vrsqrt.pop %v745
      %v762 = vrsqrt.pop %v746
      %v763 = vrsqrt.pop %v747
      %v764 = vrsqrt.pop %v748
      %v765 = vrsqrt.pop %v749
      %v766 = vrsqrt.pop %v750
      %v767 = vrsqrt.pop %v751
      %v768 = vrsqrt.pop %v752
      %v769 = vrsqrt.pop %v753
      %v770 = vrsqrt.pop %v754
      %v771 = vrsqrt.pop %v755
      %v772 = vrsqrt.pop %v756
      %v773 = vpack.c.bf16 %v678, %v677
      %v774 = vpack.c.bf16 %v680, %v679
      %v775 = vpack.c.bf16 %v682, %v681
      %v776 = vpack.c.bf16 %v684, %v683
      %v777 = vpack.c.bf16 %v686, %v685
      %v778 = vpack.c.bf16 %v688, %v687
      %v779 = vpack.c.bf16 %v690, %v689
      %v780 = vpack.c.bf16 %v692, %v691
      %v789 = vunpack.c.l.b16 %v773
      %v790 = vunpack.c.h.b16 %v773
      %v791 = vunpack.c.l.b16 %v774
      %v792 = vunpack.c.h.b16 %v774
      %v793 = vunpack.c.l.b16 %v775
      %v794 = vunpack.c.h.b16 %v775
      %v795 = vunpack.c.l.b16 %v776
      %v796 = vunpack.c.h.b16 %v776
      %v797 = vunpack.c.l.b16 %v777
      %v798 = vunpack.c.h.b16 %v777
      %v799 = vunpack.c.l.b16 %v778
      %v800 = vunpack.c.h.b16 %v778
      %v801 = vunpack.c.l.b16 %v779
      %v802 = vunpack.c.h.b16 %v779
      %v803 = vunpack.c.l.b16 %v780
      %v804 = vunpack.c.h.b16 %v780
      %v805 = vpack.c.b16 %v789, %v789
      %v806 = vpack.c.b16 %v790, %v790
      %v807 = vpack.c.b16 %v791, %v791
      %v808 = vpack.c.b16 %v792, %v792
      %v809 = vpack.c.b16 %v793, %v793
      %v810 = vpack.c.b16 %v794, %v794
      %v811 = vpack.c.b16 %v795, %v795
      %v812 = vpack.c.b16 %v796, %v796
      %v813 = vpack.c.b16 %v797, %v797
      %v814 = vpack.c.b16 %v798, %v798
      %v815 = vpack.c.b16 %v799, %v799
      %v816 = vpack.c.b16 %v800, %v800
      %v817 = vpack.c.b16 %v801, %v801
      %v818 = vpack.c.b16 %v802, %v802
      %v819 = vpack.c.b16 %v803, %v803
      %v820 = vpack.c.b16 %v804, %v804
      %837 = vst [vmem:[#allocation11] sm:$0xf] %v805
      %838 = vst [vmem:[#allocation11 + $0x4] sm:$0xf] %v806
      %839 = vst [vmem:[#allocation11 + $0x8] sm:$0xf] %v807
      %840 = vst [vmem:[#allocation11 + $0xc] sm:$0xf] %v808
      %841 = vst [vmem:[#allocation11 + $0x10] sm:$0xf] %v809
      %842 = vst [vmem:[#allocation11 + $0x14] sm:$0xf] %v810
      %843 = vst [vmem:[#allocation11 + $0x18] sm:$0xf] %v811
      %844 = vst [vmem:[#allocation11 + $0x1c] sm:$0xf] %v812
      %845 = vst [vmem:[#allocation11 + $0x20] sm:$0xf] %v813
      %846 = vst [vmem:[#allocation11 + $0x24] sm:$0xf] %v814
      %847 = vst [vmem:[#allocation11 + $0x28] sm:$0xf] %v815
      %848 = vst [vmem:[#allocation11 + $0x2c] sm:$0xf] %v816
      %849 = vst [vmem:[#allocation11 + $0x30] sm:$0xf] %v817
      %850 = vst [vmem:[#allocation11 + $0x34] sm:$0xf] %v818
      %851 = vst [vmem:[#allocation11 + $0x38] sm:$0xf] %v819
      %852 = vst [vmem:[#allocation11 + $0x3c] sm:$0xf] %v820
      %v853 = vmul.f32 %v677, %v757
      %v854 = vmul.f32 %v678, %v758
      %v855 = vmul.f32 %v679, %v759
      %v856 = vmul.f32 %v680, %v760
      %v857 = vmul.f32 %v681, %v761
      %v858 = vmul.f32 %v682, %v762
      %v859 = vmul.f32 %v683, %v763
      %v860 = vmul.f32 %v684, %v764
      %v861 = vmul.f32 %v685, %v765
      %v862 = vmul.f32 %v686, %v766
      %v863 = vmul.f32 %v687, %v767
      %v864 = vmul.f32 %v688, %v768
      %v865 = vmul.f32 %v689, %v769
      %v866 = vmul.f32 %v690, %v770
      %v867 = vmul.f32 %v691, %v771
      %v868 = vmul.f32 %v692, %v772
      %869 = vst [vmem:[#allocation12] sm:$0xff] %v853
      %870 = vst [vmem:[#allocation12 + $0x8] sm:$0xff] %v854
      %871 = vst [vmem:[#allocation12 + $0x10] sm:$0xff] %v855
      %872 = vst [vmem:[#allocation12 + $0x18] sm:$0xff] %v856
      %873 = vst [vmem:[#allocation12 + $0x20] sm:$0xff] %v857
      %874 = vst [vmem:[#allocation12 + $0x28] sm:$0xff] %v858
      %875 = vst [vmem:[#allocation12 + $0x30] sm:$0xff] %v859
      %876 = vst [vmem:[#allocation12 + $0x38] sm:$0xff] %v860
      %877 = vst [vmem:[#allocation12 + $0x40] sm:$0xff] %v861
      %878 = vst [vmem:[#allocation12 + $0x48] sm:$0xff] %v862
      %879 = vst [vmem:[#allocation12 + $0x50] sm:$0xff] %v863
      %880 = vst [vmem:[#allocation12 + $0x58] sm:$0xff] %v864
      %881 = vst [vmem:[#allocation12 + $0x60] sm:$0xff] %v865
      %882 = vst [vmem:[#allocation12 + $0x68] sm:$0xff] %v866
      %883 = vst [vmem:[#allocation12 + $0x70] sm:$0xff] %v867
      %884 = vst [vmem:[#allocation12 + $0x78] sm:$0xff] %v868
    $region45: #{tpu_custom_call.1} parent=1 // pred_fallthru
      _
    // Predicated region
    $region46: #{tpu_custom_call.1} parent=1 // pred_check
      _
    $region47: #{tpu_custom_call.1} parent=1 // pred_check_branch
      %886 = sbr.rel (0) target = $region49
    $region48: #{tpu_custom_call.1} parent=1 // pred_region
      %s888 = ssub.s32 1024, 1024
      %889 = vsyncadd [#allocation5], %s888
      %s890 = sshll.u32 [#allocation11], 4
      %s891 = int_to_ptr.vmem [resolvable:$true] %s890
      %896 = dma.vmem_to_hbm [thread:$0]  %s891, 1024, %s5, [#allocation5], 64, 64, 4
    $region49: #{tpu_custom_call.1} parent=1 // pred_fallthru
      _
    // Predicated region
    $region50: #{tpu_custom_call.1} parent=1 // pred_check
      _
    $region51: #{tpu_custom_call.1} parent=1 // pred_check_branch
      %898 = sbr.rel (0) target = $region53
    $region52: #{tpu_custom_call.1} parent=1 // pred_region
      %s900 = ssub.s32 2048, 2048
      %901 = vsyncadd [#allocation13], %s900
      %s902 = sshll.u32 [#allocation12], 4
      %s903 = int_to_ptr.vmem [resolvable:$true] %s902
      %908 = dma.vmem_to_hbm [thread:$0]  %s903, 2048, %s6, [#allocation13], 128, 128, 8
    $region53: #{tpu_custom_call.1} parent=1 // pred_fallthru
      _
    // Predicated region
    $region54: #{tpu_custom_call.1} parent=1 // pred_check
      _
    $region55: #{tpu_custom_call.1} parent=1 // pred_check_branch
      %910 = sbr.rel (0) target = $region57
    $region56: #{tpu_custom_call.1} parent=1 // pred_region
      %911 = dma.done [#allocation5], 1024
    $region57: #{tpu_custom_call.1} parent=1 // pred_fallthru
      _
    // Predicated region
    $region58: #{tpu_custom_call.1} parent=1 // pred_check
      _
    $region59: #{tpu_custom_call.1} parent=1 // pred_check_branch
      %913 = sbr.rel (0) target = $region61
    $region60: #{tpu_custom_call.1} parent=1 // pred_region
      %914 = dma.done [#allocation13], 2048
    $region61: #{tpu_custom_call.1} parent=1 // pred_fallthru
      _
    %915 = vsyncpa [#allocation4], 1
    %916 = vsyncpa [#allocation7], 1
    %917 = vsyncpa [#allocation10], 1
    %918 = vsyncpa [#allocation5], 1
    %919 = vsyncpa [#allocation13], 1

</llo_original>
